<compile_context>
chip_gen: v6e
topology: v6e:2x2x1
jax: 0.10.0
libtpu: 0.0.40
codegen_flags: <defaults>
</compile_context>

<pallas_src>
import functools

import jax
import jax.numpy as jnp
from jax.experimental import pallas as pl
from jax.experimental.pallas import tpu as pltpu


def _input_norm_kernel(x_ref, a_ref, b_ref, o_ref, *, eps, n_feat, approx_recip):
    # Block shapes:
    #   x_ref / o_ref : (TB, F, TL)  -- the reduction (feature) axis is whole
    #   a_ref / b_ref : (1,  F, 1)   -- broadcasts directly against the block
    x = x_ref[...].astype(jnp.float32)                               # (TB, F, TL)

    # mean over the feature axis
    mean = jnp.sum(x, axis=1, keepdims=True) * (1.0 / n_feat)        # (TB, 1, TL)
    xc = x - mean                                                    # (TB, F, TL)

    # unbiased variance (divide by F-1), matching torch.std default
    var = jnp.sum(xc * xc, axis=1, keepdims=True) * (1.0 / (n_feat - 1))
    std = jnp.sqrt(var)                                              # (TB, 1, TL)

    # One reciprocal on the reduced tensor; multiply instead of dividing the
    # full block.  eps is added to std (not var), exactly as in the module.
    inv = pl.reciprocal(std + eps, approx=approx_recip)              # (TB, 1, TL)

    a = a_ref[...]                                                   # (1, F, 1)
    b = b_ref[...]                                                   # (1, F, 1)
    o_ref[...] = ((a * inv) * xc + b).astype(o_ref.dtype)


def _choose_tiles(B, F, L, in_itemsize, out_itemsize, budget_bytes):
    """Pick (TB, TL) so each grid step moves a few MiB but stays within budget."""
    # VMEM bytes per block element: double-buffered input + double-buffered
    # output + one f32 working copy (the in-kernel upcast).
    per_elem = 2 * in_itemsize + 2 * out_itemsize + 4
    max_elems = max(budget_bytes // per_elem, 8 * 128)

    # Lane tile: full L if the whole (F, L) slab fits, otherwise the largest
    # multiple of 128 within budget, preferring one that divides L so the last
    # block is never partial (keeps stores unmasked / lane-dense).
    if F * L <= max_elems:
        tl = L
    else:
        max_tl = max(128, min(L, max_elems // F) // 128 * 128)
        tl = None
        for cand in range(max_tl, 0, -128):
            if L % cand == 0:
                tl = cand
                break
        if tl is None:                 # no 128-multiple divides L
            tl = min(max_tl, L)        # last block partial (masked store)

    # Batch tile: pack several batch rows per block when F*TL is small so each
    # step's HBM traffic dwarfs the per-grid-step overhead.  Prefer divisors
    # of B so no partial batch block is ever generated.
    max_tb = max(1, min(B, max_elems // (F * tl)))
    tb = max(d for d in range(1, max_tb + 1) if B % d == 0)

    # Keep >= 4 grid steps when possible (feeds both v7x TensorCores and gives
    # the pipeline room to overlap); shrink the batch tile first.
    while tb > 1 and pl.cdiv(B, tb) * pl.cdiv(L, tl) < 4:
        tb = max(d for d in range(1, tb) if B % d == 0)

    return tb, tl


def input_norm(x, a_2, b_2, eps=1e-6, vmem_budget_bytes=20 * 1024 * 1024,
               approx_recip=False):
    """x: (B, F, L); a_2, b_2: (F,) parameter vectors."""
    B, F, L = x.shape
    if F < 2:
        # torch.std with a single element is NaN (unbiased); require F >= 2.
        raise ValueError("InputNorm requires features >= 2 (unbiased std).")

    in_item = jnp.dtype(x.dtype).itemsize
    out_item = in_item
    tb, tl = _choose_tiles(B, F, L, in_item, out_item, vmem_budget_bytes)
    grid = (pl.cdiv(B, tb), pl.cdiv(L, tl))

    a3d = a_2.reshape(1, F, 1).astype(jnp.float32)
    b3d = b_2.reshape(1, F, 1).astype(jnp.float32)

    kernel = functools.partial(
        _input_norm_kernel, eps=float(eps), n_feat=F, approx_recip=approx_recip)

    # Scoped VMEM limit: blocks are budgeted to ~20 MiB, so 32 MiB is enough
    # and safe on all generations (v7x has only 64 MiB physical VMEM); allow a
    # modest raise only if an unusual shape forces a bigger minimum block.
    block_bytes = (2 * in_item + 2 * out_item + 4) * tb * F * tl
    vmem_limit = int(min(64 << 20, max(32 << 20, (block_bytes * 5) // 4)))

    cost = pl.CostEstimate(
        flops=int(7 * B * F * L),                     # two reductions + affine
        transcendentals=int(2 * B * L),               # sqrt + reciprocal per lane
        bytes_accessed=int((in_item + out_item) * B * F * L + 2 * F * 4),
    )

    # TODO(synk): for very large F, the two sublane reductions could be moved
    # to the MXU (ones(8,F) @ x); VPU path kept here since the kernel is
    # HBM-bound for typical InputNorm feature counts.
    return pl.pallas_call(
        kernel,
        out_shape=jax.ShapeDtypeStruct((B, F, L), x.dtype),
        grid_spec=pltpu.PrefetchScalarGridSpec(
            num_scalar_prefetch=0,
            grid=grid,
            in_specs=[
                pl.BlockSpec((tb, F, tl), lambda b, l: (b, 0, l)),
                pl.BlockSpec((1, F, 1), lambda b, l: (0, 0, 0)),
                pl.BlockSpec((1, F, 1), lambda b, l: (0, 0, 0)),
            ],
            out_specs=pl.BlockSpec((tb, F, tl), lambda b, l: (b, 0, l)),
        ),
        compiler_params=pltpu.CompilerParams(
            dimension_semantics=("parallel", "parallel"),
            vmem_limit_bytes=vmem_limit,
        ),
        cost_estimate=cost,
    )(x, a3d, b3d)


def _reference(x, a_2, b_2, eps=1e-6):
    # pure-JAX reference mirroring the PyTorch forward (unbiased std)
    F = x.shape[1]
    mean = jnp.mean(x, axis=1, keepdims=True)
    std = jnp.std(x, axis=1, keepdims=True, ddof=1)
    return a_2.reshape(1, F, 1) * (x - mean) / (std + eps) + b_2.reshape(1, F, 1)


if __name__ == "__main__":
    key = jax.random.PRNGKey(0)
    k_x, k_x2, k_a, k_b = jax.random.split(key, 4)

    # 1) Small shape consistent with the module: (batch, features, length).
    B, F, L = 2, 4, 16
    x = jax.random.normal(k_x, (B, F, L), dtype=jnp.float32)
    a_2 = jnp.ones((F,), dtype=jnp.float32)     # nn.Parameter(torch.ones(F))
    b_2 = jnp.zeros((F,), dtype=jnp.float32)    # nn.Parameter(torch.zeros(F))

    out = jax.block_until_ready(input_norm(x, a_2, b_2))
    ref = _reference(x, a_2, b_2)
    assert out.shape == (B, F, L)
    assert jnp.allclose(out, ref, atol=1e-5, rtol=1e-5), "mismatch (small)"

    # 2) Multi-batch / full-L blocks with non-trivial affine parameters.
    B2, F2, L2 = 4, 8, 1024
    x2 = jax.random.normal(k_x2, (B2, F2, L2), dtype=jnp.float32) * 3.0 + 0.5
    a_2b = jax.random.normal(k_a, (F2,), dtype=jnp.float32)
    b_2b = jax.random.normal(k_b, (F2,), dtype=jnp.float32)

    out2 = jax.block_until_ready(input_norm(x2, a_2b, b_2b))
    ref2 = _reference(x2, a_2b, b_2b)
    assert jnp.allclose(out2, ref2, atol=1e-4, rtol=1e-4), "mismatch (multi-batch)"

    # 3) Force a tiny VMEM budget to exercise the lane-tiled (TL < L) path
    #    (TL = 256 here, grid = (4, 4), TL divides L so no masked stores).
    out3 = jax.block_until_ready(
        input_norm(x2, a_2b, b_2b, vmem_budget_bytes=8 * 256 * 20))
    assert jnp.allclose(out3, ref2, atol=1e-4, rtol=1e-4), "mismatch (lane-tiled)"

    print("KERNEL_OK")
</pallas_src>

<mosaic_0001>
module attributes {stable_mosaic.version = 11 : i64} {
  func.func @_input_norm_kernel(%arg0: i32, %arg1: i32, %arg2: memref<1x4x16xf32, #tpu.memory_space<vmem>>, %arg3: memref<1x4x1xf32, #tpu.memory_space<vmem>>, %arg4: memref<1x4x1xf32, #tpu.memory_space<vmem>>, %arg5: memref<1x4x16xf32, #tpu.memory_space<vmem>>) attributes {dimension_semantics = [#tpu.dimension_semantics<parallel>, #tpu.dimension_semantics<parallel>], iteration_bounds = array<i64: 2, 1>, scalar_prefetch = 0 : i64, scratch_operands = 0 : i64, tpu.core_type = #tpu.core_type<tc>, window_params = [{transform_indices = @transform_0, window_bounds = array<i64: 1, 4, 16>}, {pipeline_mode = #tpu.pipeline_mode<synchronous>, transform_indices = @transform_1, window_bounds = array<i64: 1, 4, 1>}, {pipeline_mode = #tpu.pipeline_mode<synchronous>, transform_indices = @transform_2, window_bounds = array<i64: 1, 4, 1>}, {transform_indices = @transform_3, window_bounds = array<i64: 1, 4, 16>}]} {
    %c0 = arith.constant 0 : index
    %c0_0 = arith.constant 0 : index
    %c0_1 = arith.constant 0 : index
    %0 = vector.load %arg2[%c0, %c0_0, %c0_1] : memref<1x4x16xf32, #tpu.memory_space<vmem>>, vector<1x4x16xf32>
    %cst = arith.constant dense<0.000000e+00> : vector<1x16xf32>
    %1 = vector.multi_reduction <add>, %0, %cst [1] : vector<1x4x16xf32> to vector<1x16xf32>
    %2 = vector.shape_cast %1 : vector<1x16xf32> to vector<1x1x16xf32>
    %cst_2 = arith.constant 2.500000e-01 : f32
    %3 = vector.broadcast %cst_2 : f32 to vector<1x1x16xf32>
    %4 = arith.mulf %2, %3 : vector<1x1x16xf32>
    %5 = vector.broadcast %4 : vector<1x1x16xf32> to vector<1x4x16xf32>
    %6 = arith.subf %0, %5 : vector<1x4x16xf32>
    %7 = arith.mulf %6, %6 : vector<1x4x16xf32>
    %cst_3 = arith.constant dense<0.000000e+00> : vector<1x16xf32>
    %8 = vector.multi_reduction <add>, %7, %cst_3 [1] : vector<1x4x16xf32> to vector<1x16xf32>
    %9 = vector.shape_cast %8 : vector<1x16xf32> to vector<1x1x16xf32>
    %cst_4 = arith.constant 0.333333343 : f32
    %10 = vector.broadcast %cst_4 : f32 to vector<1x1x16xf32>
    %11 = arith.mulf %9, %10 : vector<1x1x16xf32>
    %12 = math.sqrt %11 : vector<1x1x16xf32>
    %cst_5 = arith.constant 9.99999997E-7 : f32
    %13 = vector.broadcast %cst_5 : f32 to vector<1x1x16xf32>
    %14 = arith.addf %12, %13 : vector<1x1x16xf32>
    %15 = tpu.reciprocal %14 : vector<1x1x16xf32> -> vector<1x1x16xf32>
    %c0_6 = arith.constant 0 : index
    %c0_7 = arith.constant 0 : index
    %c0_8 = arith.constant 0 : index
    %16 = vector.load %arg3[%c0_6, %c0_7, %c0_8] : memref<1x4x1xf32, #tpu.memory_space<vmem>>, vector<1x4x1xf32>
    %c0_9 = arith.constant 0 : index
    %c0_10 = arith.constant 0 : index
    %c0_11 = arith.constant 0 : index
    %17 = vector.load %arg4[%c0_9, %c0_10, %c0_11] : memref<1x4x1xf32, #tpu.memory_space<vmem>>, vector<1x4x1xf32>
    %18 = vector.broadcast %16 : vector<1x4x1xf32> to vector<1x4x16xf32>
    %19 = vector.broadcast %15 : vector<1x1x16xf32> to vector<1x4x16xf32>
    %20 = arith.mulf %18, %19 : vector<1x4x16xf32>
    %21 = arith.mulf %20, %6 : vector<1x4x16xf32>
    %22 = vector.broadcast %17 : vector<1x4x1xf32> to vector<1x4x16xf32>
    %23 = arith.addf %21, %22 : vector<1x4x16xf32>
    %c0_12 = arith.constant 0 : index
    %c0_13 = arith.constant 0 : index
    %c0_14 = arith.constant 0 : index
    %24 = vector.load %arg5[%c0_12, %c0_13, %c0_14] : memref<1x4x16xf32, #tpu.memory_space<vmem>>, vector<1x4x16xf32>
    tpu.vector_store %arg5[%c0_12, %c0_13, %c0_14], %23 {strides = array<i32>} : memref<1x4x16xf32, #tpu.memory_space<vmem>>, vector<1x4x16xf32>,
    return
  }
  func.func @transform_0(%arg0: i32, %arg1: i32) -> (i32, i32, i32) {
    %c0_i32 = arith.constant 0 : i32
    %c0_i32_0 = arith.constant 0 : i32
    return %arg0, %c0_i32, %arg1 : i32, i32, i32
  }
  func.func @transform_1(%arg0: i32, %arg1: i32) -> (i32, i32, i32) {
    %c0_i32 = arith.constant 0 : i32
    %c0_i32_0 = arith.constant 0 : i32
    %c0_i32_1 = arith.constant 0 : i32
    %c0_i32_2 = arith.constant 0 : i32
    return %c0_i32, %c0_i32_0, %c0_i32_1 : i32, i32, i32
  }
  func.func @transform_2(%arg0: i32, %arg1: i32) -> (i32, i32, i32) {
    %c0_i32 = arith.constant 0 : i32
    %c0_i32_0 = arith.constant 0 : i32
    %c0_i32_1 = arith.constant 0 : i32
    %c0_i32_2 = arith.constant 0 : i32
    return %c0_i32, %c0_i32_0, %c0_i32_1 : i32, i32, i32
  }
  func.func @transform_3(%arg0: i32, %arg1: i32) -> (i32, i32, i32) {
    %c0_i32 = arith.constant 0 : i32
    %c0_i32_0 = arith.constant 0 : i32
    return %arg0, %c0_i32, %arg1 : i32, i32, i32
  }
}

</mosaic_0001>

<llo_original>
// kernel: tpu_custom_call.1
$region0: #{tpu_custom_call.1}
  #allocation0 [shape = 'u32[]', space=smem, size = 0x4, offset = 0x4, fixed_abs, tag = 'smem constant byte address 0x4 - core index']
  #allocation1 [shape = 'u32[144,128]{1,0:T(1,128)}', space=vmem, size = 0x12000, scoped, tag = 'internal scratch']
  %s0 = inlined_call_operand.vmem [shape: f32[2,4,16], index: 0, kind: input, shape index: {}]
  %s1 = inlined_call_operand.vmem [shape: f32[1,4,1], index: 1, kind: input, shape index: {}]
  %s2 = inlined_call_operand.vmem [shape: f32[1,4,1], index: 2, kind: input, shape index: {}]
  %s3 = inlined_call_operand.hbm [shape: f32[2,4,16], index: 3, kind: output, shape index: {}]
  %s4 = sld [smem:[#allocation0]]
  $region45: #{tpu_custom_call.1} parent=0
    _
  %s6 = ssub.s32 1, %s4
  %s7 = scalar_select 0, %s6, %s4
  $region1: #{tpu_custom_call.1} parent=0
    #allocation2 [shape = 'u8[4096]{0}', space=vmem, size = 0x1000, scoped, tag = 'output window, operand 0']
    #allocation3 [shape = 's32[2]{0}', space=sflag, size = 0x8, scoped, tag = 'scoped memory for tpu_custom_call.1']
    %8 = vsyncpa [#allocation3], 0
    %s9 = scalar_lea.sflag [#allocation3], 1
    %10 = vsyncpa %s9, 0
    loop: start=0, step=1, limit=4
    $region2: #{tpu_custom_call.1} parent=1 // loop_pre_header
      _
    $region3: #{tpu_custom_call.1} parent=1 // loop_header
      %s12 = sphi 0, %s16
      %p13 = scmp.ge.s32.totalorder %s12, 4
      %s19 = sphi 0, %s31
      %s20 = sphi 0, %s27
      %s21 = sphi 0, %s19
      %s22 = sphi 0, %s20
      %s23 = sphi 0, %s21
      %s24 = sphi 0, %s22
      %s36 = sphi 0, %s38
      %s39 = sphi 0, %s36
      %s40 = sphi 0, %s39
      %s56 = sphi 0, %s40
      %s60 = sphi 0, %s60
      %s62 = sphi 0, %s60
      %s63 = sphi 0, %s62
      %s77 = sphi 0, %s63
      %s81 = sphi 0, %s81
      %s83 = sphi 0, %s81
      %s84 = sphi 0, %s83
      %s98 = sphi 0, %s84
      %s106 = sphi 0, %s108
      %s109 = sphi 0, %s106
      %s110 = sphi 0, %s109
      %s126 = sphi 0, %s110
    $region4: #{tpu_custom_call.1} parent=1 // loop_header_branch
      %15 = sbr.rel (%p13) target = $region8
    $region5: #{tpu_custom_call.1} parent=1 // loop_body
      %s17 = ssub.s32 %s12, 1
      %s18 = ssub.s32 %s12, 2
      %s25 = sadd.s32 1, %s20
      %p26 = scmp.ge.s32.totalorder %s25, 1
      %s27 = scalar_select %p26, 0, %s25
      %s28 = sadd.s32 1, %s19
      %s29 = scalar_select %p26, %s28, %s19
      %p30 = scmp.ge.s32.totalorder %s29, 2
      %s31 = scalar_select %p30, 0, %s29
      %s32 = ssub.s32 %s19, %s31
      %s33 = ssub.s32 %s20, %s27
      %s34 = sor.u32 %s32, %s33
      %p35 = scmp.eq.s32.totalorder %s34, 0
      %s37 = sadd.s32 %s36, 1
      %s38 = scalar_select %p35, %s36, %s37
      %p41 = pneg %p35
      %p42 = scmp.eq.s32.totalorder %s12, 1
      %p43 = por %p41, %p42
      %p44 = scmp.ne.s32.totalorder %s36, %s39
      %p45 = scmp.eq.s32.totalorder %s12, 0
      %p46 = por %p44, %p45
      %p47 = scmp.ne.s32.totalorder %s36, %s39
      %p48 = scmp.eq.s32.totalorder %s17, 1
      %p49 = por %p47, %p48
      %p50 = scmp.ne.s32.totalorder %s39, %s40
      %p51 = scmp.eq.s32.totalorder %s17, 0
      %p52 = por %p50, %p51
      %p53 = scmp.ne.s32.totalorder %s39, %s40
      %p54 = scmp.eq.s32.totalorder %s18, 1
      %p55 = por %p53, %p54
      %p57 = scmp.ne.s32.totalorder %s40, %s56
      %p58 = scmp.eq.s32.totalorder %s18, 0
      %p59 = por %p57, %p58
      %s61 = sadd.s32 %s60, 1
      %p64 = scmp.eq.s32.totalorder %s12, 1
      %p65 = scmp.ne.s32.totalorder %s60, %s62
      %p66 = scmp.eq.s32.totalorder %s12, 0
      %p67 = por %p65, %p66
      %p68 = scmp.ne.s32.totalorder %s60, %s62
      %p69 = scmp.eq.s32.totalorder %s17, 1
      %p70 = por %p68, %p69
      %p71 = scmp.ne.s32.totalorder %s62, %s63
      %p72 = scmp.eq.s32.totalorder %s17, 0
      %p73 = por %p71, %p72
      %p74 = scmp.ne.s32.totalorder %s62, %s63
      %p75 = scmp.eq.s32.totalorder %s18, 1
      %p76 = por %p74, %p75
      %p78 = scmp.ne.s32.totalorder %s63, %s77
      %p79 = scmp.eq.s32.totalorder %s18, 0
      %p80 = por %p78, %p79
      %s82 = sadd.s32 %s81, 1
      %p85 = scmp.eq.s32.totalorder %s12, 1
      %p86 = scmp.ne.s32.totalorder %s81, %s83
      %p87 = scmp.eq.s32.totalorder %s12, 0
      %p88 = por %p86, %p87
      %p89 = scmp.ne.s32.totalorder %s81, %s83
      %p90 = scmp.eq.s32.totalorder %s17, 1
      %p91 = por %p89, %p90
      %p92 = scmp.ne.s32.totalorder %s83, %s84
      %p93 = scmp.eq.s32.totalorder %s17, 0
      %p94 = por %p92, %p93
      %p95 = scmp.ne.s32.totalorder %s83, %s84
      %p96 = scmp.eq.s32.totalorder %s18, 1
      %p97 = por %p95, %p96
      %p99 = scmp.ne.s32.totalorder %s84, %s98
      %p100 = scmp.eq.s32.totalorder %s18, 0
      %p101 = por %p99, %p100
      %s102 = ssub.s32 %s19, %s31
      %s103 = ssub.s32 %s20, %s27
      %s104 = sor.u32 %s102, %s103
      %p105 = scmp.eq.s32.totalorder %s104, 0
      %s107 = sadd.s32 %s106, 1
      %s108 = scalar_select %p105, %s106, %s107
      %p111 = pneg %p105
      %p112 = scmp.eq.s32.totalorder %s12, 1
      %p113 = por %p111, %p112
      %p114 = scmp.ne.s32.totalorder %s106, %s109
      %p115 = scmp.eq.s32.totalorder %s12, 0
      %p116 = por %p114, %p115
      %p117 = scmp.ne.s32.totalorder %s106, %s109
      %p118 = scmp.eq.s32.totalorder %s17, 1
      %p119 = por %p117, %p118
      %p120 = scmp.ne.s32.totalorder %s109, %s110
      %p121 = scmp.eq.s32.totalorder %s17, 0
      %p122 = por %p120, %p121
      %p123 = scmp.ne.s32.totalorder %s109, %s110
      %p124 = scmp.eq.s32.totalorder %s18, 1
      %p125 = por %p123, %p124
      %p127 = scmp.ne.s32.totalorder %s110, %s126
      %p128 = scmp.eq.s32.totalorder %s18, 0
      %p129 = por %p127, %p128
      %p130 = scmp.le.s32.totalorder 1, %s12
      %p131 = scmp.lt.s32.totalorder %s12, 3
      %p132 = pnand %p130, %p131
      %p133 = pneg %p132
      // Predicated region
      $region9: #{tpu_custom_call.1} parent=5 // pred_check
        _
      $region10: #{tpu_custom_call.1} parent=5 // pred_check_branch
        %135 = sbr.rel (%p132) target = $region12
      $region11: #{tpu_custom_call.1} parent=5 // pred_region
        %s136 = ssub.s32 %s12, 1
        // Predicated region
        $region13: #{tpu_custom_call.1} parent=11 // pred_check
          %p137 = pneg %p73
        $region14: #{tpu_custom_call.1} parent=11 // pred_check_branch
          %139 = sbr.rel (%p137) target = $region16
        $region15: #{tpu_custom_call.1} parent=11 // pred_region
          _
        $region16: #{tpu_custom_call.1} parent=11 // pred_fallthru
          _
        // Predicated region
        $region17: #{tpu_custom_call.1} parent=11 // pred_check
          %p140 = pneg %p94
        $region18: #{tpu_custom_call.1} parent=11 // pred_check_branch
          %142 = sbr.rel (%p140) target = $region20
        $region19: #{tpu_custom_call.1} parent=11 // pred_region
          _
        $region20: #{tpu_custom_call.1} parent=11 // pred_fallthru
          _
      $region12: #{tpu_custom_call.1} parent=5 // pred_fallthru
        _
      %p143 = scmp.lt.s32.totalorder %s12, 2
      // Predicated region
      $region21: #{tpu_custom_call.1} parent=5 // pred_check
        %p144 = pneg %p143
      $region22: #{tpu_custom_call.1} parent=5 // pred_check_branch
        %146 = sbr.rel (%p144) target = $region24
      $region23: #{tpu_custom_call.1} parent=5 // pred_region
        // Predicated region
        $region25: #{tpu_custom_call.1} parent=23 // pred_check
          %p147 = pneg %p46
        $region26: #{tpu_custom_call.1} parent=23 // pred_check_branch
          %149 = sbr.rel (%p147) target = $region28
        $region27: #{tpu_custom_call.1} parent=23 // pred_region
          %p150 = scmp.lt.s32.totalorder %s19, 1
          %s151 = scalar_select %p150, %s19, 1
          %p152 = scmp.lt.s32.totalorder %s20, 0
          %s153 = scalar_select %p152, %s20, 0
          %s154 = sadd.s32 %s153, %s151
          %s155 = smul.addr %s154, 4
          %s156 = scalar_lea.vmem %s0, %s155
        $region28: #{tpu_custom_call.1} parent=23 // pred_fallthru
          _
      $region24: #{tpu_custom_call.1} parent=5 // pred_fallthru
        _
      %p157 = scmp.le.s32.totalorder 1, %s12
      %p158 = scmp.lt.s32.totalorder %s12, 3
      %p159 = pnand %p157, %p158
      %p160 = pneg %p159
      // Predicated region
      $region29: #{tpu_custom_call.1} parent=5 // pred_check
        _
      $region30: #{tpu_custom_call.1} parent=5 // pred_check_branch
        %162 = sbr.rel (%p159) target = $region32
      $region31: #{tpu_custom_call.1} parent=5 // pred_region
        %s163 = ssub.s32 %s12, 1
        %p164 = scmp.lt.s32.totalorder %s21, 1
        %s165 = scalar_select %p164, %s21, 1
        %p166 = scmp.lt.s32.totalorder %s22, 0
        %s167 = scalar_select %p166, %s22, 0
        %s168 = sadd.s32 %s167, %s165
        %s169 = smul.addr %s168, 4
        %s170 = scalar_lea.vmem %s0, %s169
        %p171 = pneg %p52
        %p172 = pneg %p49
        %p173 = pneg %p73
        %p174 = pneg %p70
        %p175 = pneg %p94
        %p176 = pneg %p91
        %p177 = pneg %p122
        %p178 = pneg %p119
        %s179 = sand.u32 %s109, 1
        %s180 = scalar_lea.sflag [#allocation3], %s179
        %s181 = sand.u32 %s109, 1
        %s182 = smul.addr %s181, 4
        %s183 = scalar_lea.vmem [#allocation2], %s182
        %p184 = scmp.lt.s32.totalorder %s21, 1
        %s185 = scalar_select %p184, %s21, 1
        %p186 = scmp.lt.s32.totalorder %s22, 0
        %s187 = scalar_select %p186, %s22, 0
        %s188 = sadd.s32 %s187, %s185
        %s189 = smul.addr %s188, 4
        %s190 = scalar_lea.vmem %s0, %s189
        %v191 = vld [vmem:[%s190] sm:$0xf]
        %vm192 = vcmask 125952
        %v193 = vsel %vm192, %v191, 0.0
        %v194 = vrot.slane %v193, 4
        %v195 = vadd.f32 %v193, %v194
        %v196 = vrot.slane %v195, 2
        %v197 = vadd.f32 %v195, %v196
        %v198 = vrot.slane %v197, 1
        %v199 = vadd.f32 %v197, %v198
        %v200 = vmul.f32 %v199, 0.25
        %v201 = vsub.f32 %v191, %v200
        %v202 = vmul.f32 %v201, %v201
        %v203 = vsel %vm192, %v202, 0.0
        %v204 = vrot.slane %v203, 4
        %v205 = vadd.f32 %v203, %v204
        %v206 = vrot.slane %v205, 2
        %v207 = vadd.f32 %v205, %v206
        %v208 = vrot.slane %v207, 1
        %v209 = vadd.f32 %v207, %v208
        %v210 = vmul.f32 %v209, 0.33333334
        %v211 = vrsqrt.pop %v210
        %v212 = vmul.f32 %v210, %v211
        %vm213 = vcmp.eq.f32.partialorder %v210, inf
        %v214 = vsel %vm213, %v210, %v212
        %vm215 = vcmp.eq.f32.partialorder %v210, 0.0
        %v216 = vand.u32 %v210, 2147483648
        %v217 = vsel %vm215, %v216, %v214
        %v218 = vadd.f32 %v217, 1e-06
        %v219 = vrcp.pop %v218
        %v220 = vld [vmem:[%s1] sm:$0xf]
        %v221 = vld [vmem:[%s2] sm:$0xf]
        %223 = vset.pattern.permute.xlu0 0
        %224 = vperm.xlu0 %223, %v220
        %v225 = vpop.permute.xlu0 %224
        %v227 = vmul.f32 %v225, %v219
        %v228 = vmul.f32 %v227, %v201
        %230 = vset.pattern.permute.xlu0 0
        %231 = vperm.xlu0 %230, %v221
        %v232 = vpop.permute.xlu0 %231
        %v234 = vadd.f32 %v228, %v232
        %235 = vst.msk [vmem:[%s183] sm:$0xf] %vm192, %v234
        %s236 = sand.u32 %s109, 1
        %s237 = scalar_lea.sflag [#allocation3], %s236
        %s238 = sand.u32 %s109, 1
        %s239 = smul.addr %s238, 4
        %s240 = scalar_lea.vmem [#allocation2], %s239
        // Predicated region
        $region33: #{tpu_custom_call.1} parent=31 // pred_check
          %p241 = pneg %p119
        $region34: #{tpu_custom_call.1} parent=31 // pred_check_branch
          %243 = sbr.rel (%p241) target = $region36
        $region35: #{tpu_custom_call.1} parent=31 // pred_region
          %s245 = ssub.s32 64, 64
          %246 = vsyncadd %s237, %s245
          %s247 = sadd.s32 %s22, %s21
          %s248 = smul.addr %s247, 64
          %s249 = scalar_lea.hbm %s3, %s248
          %s251 = sshll.u32 %s240, 4
          %s252 = int_to_ptr.vmem [resolvable:$true] %s251
          %254 = dma.vmem_to_hbm [thread:$0]  %s252, 64, %s249, %s237
        $region36: #{tpu_custom_call.1} parent=31 // pred_fallthru
          _
      $region32: #{tpu_custom_call.1} parent=5 // pred_fallthru
        _
      %p255 = scmp.le.s32.totalorder 2, %s12
      // Predicated region
      $region37: #{tpu_custom_call.1} parent=5 // pred_check
        %p256 = pneg %p255
      $region38: #{tpu_custom_call.1} parent=5 // pred_check_branch
        %258 = sbr.rel (%p256) target = $region40
      $region39: #{tpu_custom_call.1} parent=5 // pred_region
        %s259 = ssub.s32 %s12, 2
        // Predicated region
        $region41: #{tpu_custom_call.1} parent=39 // pred_check
          %p260 = pneg %p125
        $region42: #{tpu_custom_call.1} parent=39 // pred_check_branch
          %262 = sbr.rel (%p260) target = $region44
        $region43: #{tpu_custom_call.1} parent=39 // pred_region
          %s263 = sand.u32 %s110, 1
          %s264 = scalar_lea.sflag [#allocation3], %s263
          %s265 = sand.u32 %s110, 1
          %s266 = smul.addr %s265, 4
          %s267 = scalar_lea.vmem [#allocation2], %s266
          %268 = dma.done %s264, 64
        $region44: #{tpu_custom_call.1} parent=39 // pred_fallthru
          _
      $region40: #{tpu_custom_call.1} parent=5 // pred_fallthru
        _
    $region6: #{tpu_custom_call.1} parent=1 // loop_footer
      %s16 = sadd.s32 1, %s12
    $region7: #{tpu_custom_call.1} parent=1 // loop_footer_branch
      %11 = sbr.rel target = $region3
    $region8: #{tpu_custom_call.1} parent=1 // loop_exit
      _
    %269 = vsyncpa [#allocation3], 1
    %s270 = scalar_lea.sflag [#allocation3], 1
    %271 = vsyncpa %s270, 1

</llo_original>
